<compile_context>
chip_gen: v7x
topology: tpu7x:2x2x1
jax: 0.10.0
libtpu: 0.0.40
codegen_flags: <defaults>
</compile_context>

<pallas_src>
import functools

import jax
import jax.numpy as jnp
from jax.experimental import pallas as pl
from jax.experimental.pallas import tpu as pltpu

LANES = 128
SUBLANES = 8
DEFAULT_BLOCK_ROWS = 1024  # 1024*128*4B = 512 KiB per input per buffer

# Pad values that make the focal loss exactly 0.0 in f32.
_X_PAD_LOGITS = 1.0e4   # bce = max(x,0) - x*1 + log1p(exp(-x)) == 0 exactly
_X_PAD_PROBS = 1.0      # log(p)=0, (1-t)=0 kills the clamped log(1-p) term
_T_PAD = 1.0


def _round_up(x, m):
    return (x + m - 1) // m * m


def _int_pow(x, e):
    if e <= 0:
        return jnp.ones_like(x)
    r = x
    for _ in range(e - 1):
        r = r * x
    return r


def _focal_loss_elementwise(x, t, alpha, gamma, logits):
    """Per-element focal loss in f32. Matches the PyTorch reference."""
    if logits:
        # Numerically stable BCE-with-logits: max(x,0) - x*t + log(1+exp(-|x|))
        bce = jnp.maximum(x, 0.0) - x * t + jnp.log1p(jnp.exp(-jnp.abs(x)))
    else:
        # PyTorch's binary_cross_entropy clamps log outputs at -100.
        log_p = jnp.maximum(jnp.log(x), -100.0)
        log_1mp = jnp.maximum(jnp.log1p(-x), -100.0)
        bce = -(t * log_p + (1.0 - t) * log_1mp)
    pt = jnp.exp(-bce)
    one_minus_pt = 1.0 - pt
    g = float(gamma)
    if g.is_integer() and 0 <= int(g) <= 8:
        focal = _int_pow(one_minus_pt, int(g))      # fast path, e.g. gamma=2
    else:
        focal = one_minus_pt ** g
    return alpha * focal * bce


def _focal_sum_kernel(x_ref, t_ref, o_ref, acc_ref, *, alpha, gamma, logits,
                      rows_valid, block_rows):
    i = pl.program_id(0)
    nb = pl.num_programs(0)

    @pl.when(i == 0)
    def _():
        acc_ref[...] = jnp.zeros_like(acc_ref)

    x = x_ref[...].astype(jnp.float32)
    t = t_ref[...].astype(jnp.float32)

    def accumulate(xv, tv):
        loss = _focal_loss_elementwise(xv, tv, alpha, gamma, logits)
        # Fold (block_rows, 128) -> (8, 128) partials with VPU adds only; the
        # single cross-lane reduce is deferred to the last grid step.
        acc_ref[...] += loss.reshape(block_rows // SUBLANES, SUBLANES, LANES).sum(axis=0)

    @pl.when(i < nb - 1)
    def _():
        accumulate(x, t)

    @pl.when(i == nb - 1)
    def _():
        # Only the last block can run past the array. Mask the INPUTS (not the
        # loss) to zero-loss pad values so no NaN/Inf ever enters the math.
        # Row-only mask: no int32 flat-index overflow even for huge inputs.
        row = jax.lax.broadcasted_iota(jnp.int32, x.shape, 0) + i * block_rows
        valid = row < rows_valid
        pad_x = _X_PAD_LOGITS if logits else _X_PAD_PROBS
        accumulate(jnp.where(valid, x, pad_x), jnp.where(valid, t, _T_PAD))

        partial = jnp.sum(acc_ref[...], axis=0, keepdims=True)      # (1, 128)
        o_ref[...] = jnp.sum(partial, axis=1, keepdims=True)        # (1, 1) raw sum


def _focal_map_kernel(x_ref, t_ref, o_ref, *, alpha, gamma, logits):
    x = x_ref[...].astype(jnp.float32)
    t = t_ref[...].astype(jnp.float32)
    o_ref[...] = _focal_loss_elementwise(x, t, alpha, gamma, logits).astype(o_ref.dtype)


def _flatten_and_pad(inputs, targets, logits):
    """Flatten to (rows, 128) in native dtypes; pad tail with zero-loss values."""
    n_valid = int(inputs.size)
    x = jnp.ravel(inputs)
    t = jnp.ravel(targets)
    n_pad = (-n_valid) % LANES
    if n_pad:
        pad_x = _X_PAD_LOGITS if logits else _X_PAD_PROBS
        x = jnp.concatenate([x, jnp.full((n_pad,), pad_x, x.dtype)])
        t = jnp.concatenate([t, jnp.full((n_pad,), _T_PAD, t.dtype)])
    rows = x.size // LANES
    return x.reshape(rows, LANES), t.reshape(rows, LANES), rows, n_valid


def binary_focal_loss(inputs, targets, *, alpha=1.0, gamma=2.0, logits=True,
                      reduce=True, block_rows=DEFAULT_BLOCK_ROWS):
    """JAX/Pallas equivalent of BinaryFocalLoss.forward."""
    assert inputs.shape == targets.shape
    orig_shape = inputs.shape

    x2, t2, rows, n_valid = _flatten_and_pad(inputs, targets, logits)

    block_rows = min(int(block_rows), _round_up(rows, SUBLANES))
    block_rows = _round_up(block_rows, SUBLANES)
    n_blocks = pl.cdiv(rows, block_rows)

    if reduce:
        kernel = functools.partial(
            _focal_sum_kernel, alpha=float(alpha), gamma=float(gamma),
            logits=bool(logits), rows_valid=rows, block_rows=block_rows)
        total = pl.pallas_call(
            kernel,
            out_shape=jax.ShapeDtypeStruct((1, 1), jnp.float32),
            grid_spec=pltpu.PrefetchScalarGridSpec(
                num_scalar_prefetch=0,
                grid=(n_blocks,),
                in_specs=[
                    pl.BlockSpec((block_rows, LANES), lambda i: (i, 0)),
                    pl.BlockSpec((block_rows, LANES), lambda i: (i, 0)),
                ],
                out_specs=pl.BlockSpec((1, 1), lambda i: (0, 0)),
                scratch_shapes=[pltpu.VMEM((SUBLANES, LANES), jnp.float32)],
            ),
            compiler_params=pltpu.CompilerParams(
                dimension_semantics=("arbitrary",)),
        )(x2, t2)
        return total[0, 0] / jnp.float32(n_valid)

    # reduce=False: elementwise focal loss map, same shape as the input.
    kernel = functools.partial(
        _focal_map_kernel, alpha=float(alpha), gamma=float(gamma), logits=bool(logits))
    loss2 = pl.pallas_call(
        kernel,
        out_shape=jax.ShapeDtypeStruct((rows, LANES), jnp.float32),
        grid_spec=pltpu.PrefetchScalarGridSpec(
            num_scalar_prefetch=0,
            grid=(n_blocks,),
            in_specs=[
                pl.BlockSpec((block_rows, LANES), lambda i: (i, 0)),
                pl.BlockSpec((block_rows, LANES), lambda i: (i, 0)),
            ],
            out_specs=pl.BlockSpec((block_rows, LANES), lambda i: (i, 0)),
        ),
        compiler_params=pltpu.CompilerParams(
            dimension_semantics=("parallel",)),
    )(x2, t2)
    return loss2.reshape(-1)[:n_valid].reshape(orig_shape)


def _reference(inputs, targets, alpha=1.0, gamma=2.0, logits=True, reduce=True):
    x = inputs.astype(jnp.float32)
    t = targets.astype(jnp.float32)
    if logits:
        bce = jnp.maximum(x, 0.0) - x * t + jnp.log1p(jnp.exp(-jnp.abs(x)))
    else:
        bce = -(t * jnp.maximum(jnp.log(x), -100.0)
                + (1.0 - t) * jnp.maximum(jnp.log1p(-x), -100.0))
    pt = jnp.exp(-bce)
    f = alpha * (1.0 - pt) ** gamma * bce
    return jnp.mean(f) if reduce else f


if __name__ == "__main__":
    key = jax.random.PRNGKey(0)
    k1, k2 = jax.random.split(key)

    # Default config: logits=True, alpha=1, gamma=2, reduce=True; NCHW input.
    shape = (2, 4, 16, 16)
    logits_in = jax.random.normal(k1, shape, jnp.float32)
    targets = (jax.random.uniform(k2, shape) > 0.5).astype(jnp.float32)

    out = binary_focal_loss(logits_in, targets)
    out = jax.block_until_ready(out)
    ref = _reference(logits_in, targets)
    assert jnp.allclose(out, ref, rtol=1e-5, atol=1e-6), (out, ref)

    # reduce=False (elementwise map).
    out_map = binary_focal_loss(logits_in, targets, reduce=False)
    out_map = jax.block_until_ready(out_map)
    ref_map = _reference(logits_in, targets, reduce=False)
    assert jnp.allclose(out_map, ref_map, rtol=1e-5, atol=1e-6)

    # logits=False with a ragged (non multiple-of-128) size.
    shape2 = (3, 5, 7, 11)
    probs = jax.random.uniform(k1, shape2, jnp.float32, minval=0.02, maxval=0.98)
    targets2 = (jax.random.uniform(k2, shape2) > 0.5).astype(jnp.float32)
    out2 = binary_focal_loss(probs, targets2, alpha=0.25, gamma=2, logits=False)
    out2 = jax.block_until_ready(out2)
    ref2 = _reference(probs, targets2, alpha=0.25, gamma=2.0, logits=False)
    assert jnp.allclose(out2, ref2, rtol=1e-5, atol=1e-6), (out2, ref2)

    print("KERNEL_OK")
</pallas_src>

<mosaic_0001>
module attributes {stable_mosaic.version = 11 : i64} {
  func.func @_focal_sum_kernel(%arg0: i32, %arg1: memref<16x128xf32, #tpu.memory_space<vmem>>, %arg2: memref<16x128xf32, #tpu.memory_space<vmem>>, %arg3: memref<1x1xf32, #tpu.memory_space<vmem>>, %arg4: memref<8x128xf32, #tpu.memory_space<vmem>>) attributes {dimension_semantics = [#tpu.dimension_semantics<arbitrary>], iteration_bounds = array<i64: 1>, scalar_prefetch = 0 : i64, scratch_operands = 1 : i64, tpu.core_type = #tpu.core_type<tc>, window_params = [{transform_indices = @transform_0, window_bounds = array<i64: 16, 128>}, {transform_indices = @transform_1, window_bounds = array<i64: 16, 128>}, {pipeline_mode = #tpu.pipeline_mode<synchronous>, transform_indices = @transform_2, window_bounds = array<i64: 1, 1>}]} {
    %c0_i32 = arith.constant 0 : i32
    %0 = arith.cmpi eq, %arg0, %c0_i32 : i32
    %1 = arith.extui %0 : i1 to i32
    %c0_i32_0 = arith.constant 0 : i32
    %2 = arith.cmpi ne, %1, %c0_i32_0 : i32
    scf.if %2 {
      %cst = arith.constant 0.000000e+00 : f32
      %11 = vector.broadcast %cst : f32 to vector<8x128xf32>
      %c0_8 = arith.constant 0 : index
      %c0_9 = arith.constant 0 : index
      %12 = vector.load %arg4[%c0_8, %c0_9] : memref<8x128xf32, #tpu.memory_space<vmem>>, vector<8x128xf32>
      tpu.vector_store %arg4[%c0_8, %c0_9], %11 {strides = array<i32>} : memref<8x128xf32, #tpu.memory_space<vmem>>, vector<8x128xf32>,
    } else {
    }
    %c0 = arith.constant 0 : index
    %c0_1 = arith.constant 0 : index
    %3 = vector.load %arg1[%c0, %c0_1] : memref<16x128xf32, #tpu.memory_space<vmem>>, vector<16x128xf32>
    %c0_2 = arith.constant 0 : index
    %c0_3 = arith.constant 0 : index
    %4 = vector.load %arg2[%c0_2, %c0_3] : memref<16x128xf32, #tpu.memory_space<vmem>>, vector<16x128xf32>
    %c0_i32_4 = arith.constant 0 : i32
    %5 = arith.cmpi slt, %arg0, %c0_i32_4 : i32
    %6 = arith.extui %5 : i1 to i32
    %c0_i32_5 = arith.constant 0 : i32
    %7 = arith.cmpi ne, %6, %c0_i32_5 : i32
    scf.if %7 {
      %cst = arith.constant 0.000000e+00 : f32
      %11 = vector.broadcast %cst : f32 to vector<16x128xf32>
      %12 = arith.maximumf %3, %11 : vector<16x128xf32>
      %13 = arith.mulf %3, %4 : vector<16x128xf32>
      %14 = arith.subf %12, %13 : vector<16x128xf32>
      %15 = math.absf %3 : vector<16x128xf32>
      %cst_8 = arith.constant 0.000000e+00 : f32
      %16 = vector.broadcast %cst_8 : f32 to vector<16x128xf32>
      %17 = arith.subf %16, %15 : vector<16x128xf32>
      %18 = math.exp %17 : vector<16x128xf32>
      %19 = math.log1p %18 : vector<16x128xf32>
      %20 = arith.addf %14, %19 : vector<16x128xf32>
      %cst_9 = arith.constant 0.000000e+00 : f32
      %21 = vector.broadcast %cst_9 : f32 to vector<16x128xf32>
      %22 = arith.subf %21, %20 : vector<16x128xf32>
      %23 = math.exp %22 : vector<16x128xf32>
      %cst_10 = arith.constant 1.000000e+00 : f32
      %24 = vector.broadcast %cst_10 : f32 to vector<16x128xf32>
      %25 = arith.subf %24, %23 : vector<16x128xf32>
      %26 = arith.mulf %25, %25 : vector<16x128xf32>
      %cst_11 = arith.constant 1.000000e+00 : f32
      %27 = vector.broadcast %cst_11 : f32 to vector<16x128xf32>
      %28 = arith.mulf %27, %26 : vector<16x128xf32>
      %29 = arith.mulf %28, %20 : vector<16x128xf32>
      %c0_12 = arith.constant 0 : index
      %c0_13 = arith.constant 0 : index
      %30 = vector.load %arg4[%c0_12, %c0_13] : memref<8x128xf32, #tpu.memory_space<vmem>>, vector<8x128xf32>
      %31 = vector.shape_cast %29 : vector<16x128xf32> to vector<2x8x128xf32>
      %cst_14 = arith.constant dense<0.000000e+00> : vector<8x128xf32>
      %32 = vector.multi_reduction <add>, %31, %cst_14 [0] : vector<2x8x128xf32> to vector<8x128xf32>
      %33 = arith.addf %30, %32 : vector<8x128xf32>
      %c0_15 = arith.constant 0 : index
      %c0_16 = arith.constant 0 : index
      %34 = vector.load %arg4[%c0_15, %c0_16] : memref<8x128xf32, #tpu.memory_space<vmem>>, vector<8x128xf32>
      tpu.vector_store %arg4[%c0_15, %c0_16], %33 {strides = array<i32>} : memref<8x128xf32, #tpu.memory_space<vmem>>, vector<8x128xf32>,
    } else {
    }
    %c0_i32_6 = arith.constant 0 : i32
    %8 = arith.cmpi eq, %arg0, %c0_i32_6 : i32
    %9 = arith.extui %8 : i1 to i32
    %c0_i32_7 = arith.constant 0 : i32
    %10 = arith.cmpi ne, %9, %c0_i32_7 : i32
    scf.if %10 {
      %11 = tpu.iota {dimensions = array<i32: 0>} : vector<16x128xi32>
      %c16_i32 = arith.constant 16 : i32
      %12 = arith.muli %arg0, %c16_i32 : i32
      %13 = vector.broadcast %12 : i32 to vector<16x128xi32>
      %14 = arith.addi %11, %13 : vector<16x128xi32>
      %c16_i32_8 = arith.constant 16 : i32
      %15 = vector.broadcast %c16_i32_8 : i32 to vector<16x128xi32>
      %16 = arith.cmpi slt, %14, %15 : vector<16x128xi32>
      %cst = arith.constant 1.000000e+04 : f32
      %17 = vector.broadcast %cst : f32 to vector<16x128xf32>
      %18 = arith.select %16, %3, %17 : vector<16x128xi1>, vector<16x128xf32>
      %cst_9 = arith.constant 1.000000e+00 : f32
      %19 = vector.broadcast %cst_9 : f32 to vector<16x128xf32>
      %20 = arith.select %16, %4, %19 : vector<16x128xi1>, vector<16x128xf32>
      %cst_10 = arith.constant 0.000000e+00 : f32
      %21 = vector.broadcast %cst_10 : f32 to vector<16x128xf32>
      %22 = arith.maximumf %18, %21 : vector<16x128xf32>
      %23 = arith.mulf %18, %20 : vector<16x128xf32>
      %24 = arith.subf %22, %23 : vector<16x128xf32>
      %25 = math.absf %18 : vector<16x128xf32>
      %cst_11 = arith.constant 0.000000e+00 : f32
      %26 = vector.broadcast %cst_11 : f32 to vector<16x128xf32>
      %27 = arith.subf %26, %25 : vector<16x128xf32>
      %28 = math.exp %27 : vector<16x128xf32>
      %29 = math.log1p %28 : vector<16x128xf32>
      %30 = arith.addf %24, %29 : vector<16x128xf32>
      %cst_12 = arith.constant 0.000000e+00 : f32
      %31 = vector.broadcast %cst_12 : f32 to vector<16x128xf32>
      %32 = arith.subf %31, %30 : vector<16x128xf32>
      %33 = math.exp %32 : vector<16x128xf32>
      %cst_13 = arith.constant 1.000000e+00 : f32
      %34 = vector.broadcast %cst_13 : f32 to vector<16x128xf32>
      %35 = arith.subf %34, %33 : vector<16x128xf32>
      %36 = arith.mulf %35, %35 : vector<16x128xf32>
      %cst_14 = arith.constant 1.000000e+00 : f32
      %37 = vector.broadcast %cst_14 : f32 to vector<16x128xf32>
      %38 = arith.mulf %37, %36 : vector<16x128xf32>
      %39 = arith.mulf %38, %30 : vector<16x128xf32>
      %c0_15 = arith.constant 0 : index
      %c0_16 = arith.constant 0 : index
      %40 = vector.load %arg4[%c0_15, %c0_16] : memref<8x128xf32, #tpu.memory_space<vmem>>, vector<8x128xf32>
      %41 = vector.shape_cast %39 : vector<16x128xf32> to vector<2x8x128xf32>
      %cst_17 = arith.constant dense<0.000000e+00> : vector<8x128xf32>
      %42 = vector.multi_reduction <add>, %41, %cst_17 [0] : vector<2x8x128xf32> to vector<8x128xf32>
      %43 = arith.addf %40, %42 : vector<8x128xf32>
      %c0_18 = arith.constant 0 : index
      %c0_19 = arith.constant 0 : index
      %44 = vector.load %arg4[%c0_18, %c0_19] : memref<8x128xf32, #tpu.memory_space<vmem>>, vector<8x128xf32>
      tpu.vector_store %arg4[%c0_18, %c0_19], %43 {strides = array<i32>} : memref<8x128xf32, #tpu.memory_space<vmem>>, vector<8x128xf32>,
      %c0_20 = arith.constant 0 : index
      %c0_21 = arith.constant 0 : index
      %45 = vector.load %arg4[%c0_20, %c0_21] : memref<8x128xf32, #tpu.memory_space<vmem>>, vector<8x128xf32>
      %cst_22 = arith.constant dense<0.000000e+00> : vector<128xf32>
      %46 = vector.multi_reduction <add>, %45, %cst_22 [0] : vector<8x128xf32> to vector<128xf32>
      %47 = vector.shape_cast %46 : vector<128xf32> to vector<1x128xf32>
      %cst_23 = arith.constant dense<0.000000e+00> : vector<1xf32>
      %48 = vector.multi_reduction <add>, %47, %cst_23 [1] : vector<1x128xf32> to vector<1xf32>
      %49 = vector.shape_cast %48 : vector<1xf32> to vector<1x1xf32>
      %c0_24 = arith.constant 0 : index
      %c0_25 = arith.constant 0 : index
      %50 = vector.load %arg3[%c0_24, %c0_25] : memref<1x1xf32, #tpu.memory_space<vmem>>, vector<1x1xf32>
      tpu.vector_store %arg3[%c0_24, %c0_25], %49 {strides = array<i32>} : memref<1x1xf32, #tpu.memory_space<vmem>>, vector<1x1xf32>,
    } else {
    }
    return
  }
  func.func @transform_0(%arg0: i32) -> (i32, i32) {
    %c0_i32 = arith.constant 0 : i32
    %c0_i32_0 = arith.constant 0 : i32
    return %arg0, %c0_i32 : i32, i32
  }
  func.func @transform_1(%arg0: i32) -> (i32, i32) {
    %c0_i32 = arith.constant 0 : i32
    %c0_i32_0 = arith.constant 0 : i32
    return %arg0, %c0_i32 : i32, i32
  }
  func.func @transform_2(%arg0: i32) -> (i32, i32) {
    %c0_i32 = arith.constant 0 : i32
    %c0_i32_0 = arith.constant 0 : i32
    %c0_i32_1 = arith.constant 0 : i32
    return %c0_i32, %c0_i32_0 : i32, i32
  }
}

</mosaic_0001>

<llo_original>
// kernel: tpu_custom_call.1
$region0: #{tpu_custom_call.1}
  #allocation0 [shape = 'u32[]', space=smem, size = 0x4, offset = 0x4, fixed_abs, tag = 'smem constant byte address 0x4 - core index']
  #allocation1 [shape = 'u32[144,128]{1,0:T(1,128)}', space=vmem, size = 0x12000, scoped, tag = 'internal scratch']
  #allocation2 [shape = 'f32[8,128]{1,0:T(8,128)}', space=vmem, size = 0x1000, scoped, tag = 'scratch operand']
  %s0 = inlined_call_operand.hbm [shape: f32[16,128], index: 0, kind: input, shape index: {}]
  %s1 = inlined_call_operand.hbm [shape: f32[16,128], index: 1, kind: input, shape index: {}]
  %s2 = inlined_call_operand.hbm [shape: f32[1,1], index: 2, kind: output, shape index: {}]
  %s3 = sld [smem:[#allocation0]]
  $region38: #{tpu_custom_call.1} parent=0
    _
  %s5 = ssub.s32 1, %s3
  %s6 = scalar_select 0, %s5, %s3
  $region1: #{tpu_custom_call.1} parent=0
    #allocation3 [shape = 'u8[8192]{0}', space=vmem, size = 0x2000, scoped, tag = 'input window, operand 0, single buffered']
    #allocation4 [shape = 's32[1]{0}', space=sflag, size = 0x4, scoped, tag = 'scoped memory for tpu_custom_call.1']
    #allocation5 [shape = 's32[1]{0}', space=sflag, size = 0x4, scoped, tag = 'scoped memory for tpu_custom_call.1']
    #allocation6 [shape = 'u8[8192]{0}', space=vmem, size = 0x2000, scoped, tag = 'input window, operand 1, single buffered']
    #allocation7 [shape = 's32[1]{0}', space=sflag, size = 0x4, scoped, tag = 'scoped memory for tpu_custom_call.1']
    #allocation8 [shape = 'u8[512]{0}', space=vmem, size = 0x400, scoped, tag = 'output window, operand 0, single buffered']
    %7 = vsyncpa [#allocation4], 0
    %8 = vsyncpa [#allocation7], 0
    %9 = vsyncpa [#allocation5], 0
    // Predicated region
    $region2: #{tpu_custom_call.1} parent=1 // pred_check
      _
    $region3: #{tpu_custom_call.1} parent=1 // pred_check_branch
      %11 = sbr.rel (0) target = $region5
    $region4: #{tpu_custom_call.1} parent=1 // pred_region
      %s13 = ssub.s32 256, 256
      %14 = vsyncadd [#allocation4], %s13
      %s15 = sshll.u32 [#allocation3], 4
      %s16 = int_to_ptr.vmem [resolvable:$true] %s15
      %21 = dma.hbm_to_vmem [thread:$0]  %s0, 256, %s16, [#allocation4], 128, 128, 8
    $region5: #{tpu_custom_call.1} parent=1 // pred_fallthru
      _
    // Predicated region
    $region6: #{tpu_custom_call.1} parent=1 // pred_check
      _
    $region7: #{tpu_custom_call.1} parent=1 // pred_check_branch
      %23 = sbr.rel (0) target = $region9
    $region8: #{tpu_custom_call.1} parent=1 // pred_region
      %s25 = ssub.s32 256, 256
      %26 = vsyncadd [#allocation7], %s25
      %s27 = sshll.u32 [#allocation6], 4
      %s28 = int_to_ptr.vmem [resolvable:$true] %s27
      %33 = dma.hbm_to_vmem [thread:$0]  %s1, 256, %s28, [#allocation7], 128, 128, 8
    $region9: #{tpu_custom_call.1} parent=1 // pred_fallthru
      _
    // Predicated region
    $region10: #{tpu_custom_call.1} parent=1 // pred_check
      _
    $region11: #{tpu_custom_call.1} parent=1 // pred_check_branch
      %35 = sbr.rel (0) target = $region13
    $region12: #{tpu_custom_call.1} parent=1 // pred_region
      %36 = dma.done [#allocation4], 256
    $region13: #{tpu_custom_call.1} parent=1 // pred_fallthru
      _
    // Predicated region
    $region14: #{tpu_custom_call.1} parent=1 // pred_check
      _
    $region15: #{tpu_custom_call.1} parent=1 // pred_check_branch
      %38 = sbr.rel (0) target = $region17
    $region16: #{tpu_custom_call.1} parent=1 // pred_region
      %39 = dma.done [#allocation7], 256
    $region17: #{tpu_custom_call.1} parent=1 // pred_fallthru
      _
    %p40 = scmp.eq.s32.totalorder 0, 0
    // Predicated region
    $region18: #{tpu_custom_call.1} parent=1 // pred_check
      %p41 = pneg %p40
    $region19: #{tpu_custom_call.1} parent=1 // pred_check_branch
      %43 = sbr.rel (%p41) target = $region21
    $region20: #{tpu_custom_call.1} parent=1 // pred_region
      %44 = vst [vmem:[#allocation2] sm:$0xff] 0.0
    $region21: #{tpu_custom_call.1} parent=1 // pred_fallthru
      _
    %v45 = vld [vmem:[#allocation3] sm:$0xff]
    %v46 = vld [vmem:[#allocation3 + $0x8] sm:$0xff]
    %v47 = vld [vmem:[#allocation6] sm:$0xff]
    %v48 = vld [vmem:[#allocation6 + $0x8] sm:$0xff]
    %p49 = scmp.lt.s32.totalorder 0, 0
    // Predicated region
    $region22: #{tpu_custom_call.1} parent=1 // pred_check
      %p50 = pneg %p49
    $region23: #{tpu_custom_call.1} parent=1 // pred_check_branch
      %52 = sbr.rel (%p50) target = $region25
    $region24: #{tpu_custom_call.1} parent=1 // pred_region
      %v53 = vmax.f32 %v45, 0.0
      %v54 = vmax.f32 %v46, 0.0
      %v55 = vmul.f32 %v45, %v47
      %v56 = vmul.f32 %v46, %v48
      %v57 = vsub.f32 %v53, %v55
      %v58 = vsub.f32 %v54, %v56
      %v59 = vand.u32 2147483647, %v45
      %v60 = vand.u32 2147483647, %v46
      %v61 = vsub.f32 0.0, %v59
      %v62 = vsub.f32 0.0, %v60
      %v63 = vmul.f32 %v61, 1.442695
      %v64 = vpow.pop %v63
      %v65 = vmul.f32 %v62, 1.442695
      %v66 = vpow.pop %v65
      %v67 = vadd.f32 %v64, 1.0
      %v68 = vlog2.pop %v67
      %v69 = vmul.f32 %v68, 0.6931472
      %v70 = vmul.f32 -0.5, %v64
      %v71 = vadd.f32 %v70, 1.0
      %v72 = vmul.f32 %v71, %v64
      %v73 = vand.u32 2147483647, %v64
      %vm74 = vcmp.lt.f32.partialorder %v73, 0.0004427343
      %v75 = vsel %vm74, %v72, %v69
      %v76 = vadd.f32 %v66, 1.0
      %v77 = vlog2.pop %v76
      %v78 = vmul.f32 %v77, 0.6931472
      %v79 = vmul.f32 -0.5, %v66
      %v80 = vadd.f32 %v79, 1.0
      %v81 = vmul.f32 %v80, %v66
      %v82 = vand.u32 2147483647, %v66
      %vm83 = vcmp.lt.f32.partialorder %v82, 0.0004427343
      %v84 = vsel %vm83, %v81, %v78
      %v85 = vadd.f32 %v57, %v75
      %v86 = vadd.f32 %v58, %v84
      %v87 = vsub.f32 0.0, %v85
      %v88 = vsub.f32 0.0, %v86
      %v89 = vmul.f32 %v87, 1.442695
      %v90 = vpow.pop %v89
      %v91 = vmul.f32 %v88, 1.442695
      %v92 = vpow.pop %v91
      %v93 = vsub.f32 1.0, %v90
      %v94 = vsub.f32 1.0, %v92
      %v95 = vmul.f32 %v93, %v93
      %v96 = vmul.f32 %v94, %v94
      %v97 = vmul.f32 %v95, %v85
      %v98 = vmul.f32 %v96, %v86
      %v99 = vld [vmem:[#allocation2] sm:$0xff]
      %v100 = vadd.f32 %v97, %v98
      %v101 = vadd.f32 %v99, %v100
      %102 = vst [vmem:[#allocation2] sm:$0xff] %v101
    $region25: #{tpu_custom_call.1} parent=1 // pred_fallthru
      _
    // Predicated region
    $region26: #{tpu_custom_call.1} parent=1 // pred_check
      %p103 = pneg %p40
    $region27: #{tpu_custom_call.1} parent=1 // pred_check_branch
      %105 = sbr.rel (%p103) target = $region29
    $region28: #{tpu_custom_call.1} parent=1 // pred_region
      %v106 = vlaneseq
      %v107 = vshrl.u32 %v106, 7
      %v108 = vadd.s32 %v107, 8
      %s109 = smul.u32 0, 16
      %v110 = vstv %s109
      %v111 = vadd.s32 %v107, %v110
      %v112 = vadd.s32 %v108, %v110
      %vm113 = vcmp.lt.s32.totalorder %v111, 16
      %vm114 = vcmp.lt.s32.totalorder %v112, 16
      %v115 = vsel %vm113, %v45, 10000.0
      %v116 = vsel %vm114, %v46, 10000.0
      %v117 = vsel %vm113, %v47, 1.0
      %v118 = vsel %vm114, %v48, 1.0
      %v119 = vmax.f32 %v115, 0.0
      %v120 = vmax.f32 %v116, 0.0
      %v121 = vmul.f32 %v115, %v117
      %v122 = vmul.f32 %v116, %v118
      %v123 = vsub.f32 %v119, %v121
      %v124 = vsub.f32 %v120, %v122
      %v125 = vand.u32 2147483647, %v115
      %v126 = vand.u32 2147483647, %v116
      %v127 = vsub.f32 0.0, %v125
      %v128 = vsub.f32 0.0, %v126
      %v129 = vmul.f32 %v127, 1.442695
      %v130 = vpow.pop %v129
      %v131 = vmul.f32 %v128, 1.442695
      %v132 = vpow.pop %v131
      %v133 = vadd.f32 %v130, 1.0
      %v134 = vlog2.pop %v133
      %v135 = vmul.f32 %v134, 0.6931472
      %v136 = vmul.f32 -0.5, %v130
      %v137 = vadd.f32 %v136, 1.0
      %v138 = vmul.f32 %v137, %v130
      %v139 = vand.u32 2147483647, %v130
      %vm140 = vcmp.lt.f32.partialorder %v139, 0.0004427343
      %v141 = vsel %vm140, %v138, %v135
      %v142 = vadd.f32 %v132, 1.0
      %v143 = vlog2.pop %v142
      %v144 = vmul.f32 %v143, 0.6931472
      %v145 = vmul.f32 -0.5, %v132
      %v146 = vadd.f32 %v145, 1.0
      %v147 = vmul.f32 %v146, %v132
      %v148 = vand.u32 2147483647, %v132
      %vm149 = vcmp.lt.f32.partialorder %v148, 0.0004427343
      %v150 = vsel %vm149, %v147, %v144
      %v151 = vadd.f32 %v123, %v141
      %v152 = vadd.f32 %v124, %v150
      %v153 = vsub.f32 0.0, %v151
      %v154 = vsub.f32 0.0, %v152
      %v155 = vmul.f32 %v153, 1.442695
      %v156 = vpow.pop %v155
      %v157 = vmul.f32 %v154, 1.442695
      %v158 = vpow.pop %v157
      %v159 = vsub.f32 1.0, %v156
      %v160 = vsub.f32 1.0, %v158
      %v161 = vmul.f32 %v159, %v159
      %v162 = vmul.f32 %v160, %v160
      %v163 = vmul.f32 %v161, %v151
      %v164 = vmul.f32 %v162, %v152
      %v165 = vld [vmem:[#allocation2] sm:$0xff]
      %v166 = vadd.f32 %v163, %v164
      %v167 = vadd.f32 %v165, %v166
      %168 = vst [vmem:[#allocation2] sm:$0xff] %v167
      %v169 = vld [vmem:[#allocation2] sm:$0xff]
      %v170 = vrot.slane %v169, 4
      %v171 = vadd.f32 %v169, %v170
      %v172 = vrot.slane %v171, 2
      %v173 = vadd.f32 %v171, %v172
      %v174 = vrot.slane %v173, 1
      %v175 = vadd.f32 %v173, %v174
      %176 = vadd.xlane.f32.xlu0 %v175
      %v177 = vpop.xlane.xlu0 %176
      %vm178 = vcmask 0
      %179 = vst.msk [vmem:[#allocation8] sm:$0x1] %vm178, %v177
    $region29: #{tpu_custom_call.1} parent=1 // pred_fallthru
      _
    // Predicated region
    $region30: #{tpu_custom_call.1} parent=1 // pred_check
      _
    $region31: #{tpu_custom_call.1} parent=1 // pred_check_branch
      %181 = sbr.rel (0) target = $region33
    $region32: #{tpu_custom_call.1} parent=1 // pred_region
      %s183 = ssub.s32 16, 16
      %184 = vsyncadd [#allocation5], %s183
      %s186 = sshll.u32 [#allocation8], 4
      %s187 = int_to_ptr.vmem [resolvable:$true] %s186
      %189 = dma.vmem_to_hbm [thread:$0]  %s187, 16, %s2, [#allocation5]
    $region33: #{tpu_custom_call.1} parent=1 // pred_fallthru
      _
    // Predicated region
    $region34: #{tpu_custom_call.1} parent=1 // pred_check
      _
    $region35: #{tpu_custom_call.1} parent=1 // pred_check_branch
      %191 = sbr.rel (0) target = $region37
    $region36: #{tpu_custom_call.1} parent=1 // pred_region
      %192 = dma.done [#allocation5], 16
    $region37: #{tpu_custom_call.1} parent=1 // pred_fallthru
      _
    %193 = vsyncpa [#allocation4], 1
    %194 = vsyncpa [#allocation7], 1
    %195 = vsyncpa [#allocation5], 1

</llo_original>
